<compile_context>
chip_gen: v7x
topology: tpu7x:2x2x1
jax: 0.10.0
libtpu: 0.0.40
codegen_flags: <defaults>
</compile_context>

<pallas_src>
import functools

import jax
import jax.numpy as jnp
from jax import lax
from jax.experimental import pallas as pl
from jax.experimental.pallas import tpu as pltpu


def _round_up(v, m):
    return (v + m - 1) // m * m


def _pick_b_tile(n):
    """Images per grid step: amortise per-step overhead but keep grid >= 2."""
    for bt in (8, 4, 2):
        if n % bt == 0 and n // bt >= 2:
            return bt
    return 1


# ---------------------------------------------------------------------------
# Kernel
# ---------------------------------------------------------------------------
def dir_full_dil_kernel(
    x_ref,    # (B_TILE, cin_pad, lx)        f32 zero-padded row-major images
    w_ref,    # (rows, kmax)                 f32 packed fused conv weights
    b_ref,    # (rows, 1)                    f32 packed biases
    o_ref,    # (B_TILE, c_out_pad, la_out)  f32
    *, row_w, la1, la_out, cin_pad, n_mid_pad, n_out_d_pad, n_out2_pad, b_tile,
):
    k1 = 9 * cin_pad
    k2 = 9 * n_mid_pad

    # Weight slab rows: [stage2 | stage1 | dilated].  Cast to bf16 once per
    # grid step (single-pass MXU operands); biases stay f32.
    wslab = w_ref[...]
    bslab = b_ref[...]
    r0 = 0
    w2 = wslab[r0:r0 + n_out2_pad, :k2].astype(jnp.bfloat16)
    b2 = bslab[r0:r0 + n_out2_pad]
    r0 += n_out2_pad
    w1 = wslab[r0:r0 + n_mid_pad, :k1].astype(jnp.bfloat16)
    b1 = bslab[r0:r0 + n_mid_pad]
    r0 += n_mid_pad
    wd = wslab[r0:r0 + n_out_d_pad, :k1].astype(jnp.bfloat16)
    bd = bslab[r0:r0 + n_out_d_pad]

    # Row-major flattening keeps the row stride at W for every slab, so a conv
    # tap is a static lane-window at offset dil*(ky*W + kx).
    offs = tuple(ky * row_w + kx for ky in range(3) for kx in range(3))

    def stack_taps(src, la, dil):
        # (c, L) -> (9*c, la); tap t=ky*3+kx occupies sublane rows [t*c,(t+1)*c).
        return jnp.concatenate(
            [src[:, dil * o:dil * o + la] for o in offs], axis=0)

    # Static (fully unrolled) loop over the images of this grid step; b_tile is
    # small so the live-range growth is bounded and all indexing stays static.
    for b in range(b_tile):
        xb = x_ref[b]                                          # (cin_pad, lx) f32

        # Dilated branch: hd/vd/fd fused, dilation purely via tap offsets.
        sd = stack_taps(xb, la_out, 2).astype(jnp.bfloat16)     # (9*cin_pad, la_out)
        out_d = jnp.dot(wd, sd, preferred_element_type=jnp.float32) + bd

        # Stage 1: h1/v1/f1 fused, then softplus (EUP).
        s1 = stack_taps(xb, la1, 1).astype(jnp.bfloat16)        # (9*cin_pad, la1)
        mid = jax.nn.softplus(
            jnp.dot(w1, s1, preferred_element_type=jnp.float32) + b1)

        # Stage 2: h2/v2/f2 fused, consuming the stage-1 slab directly (same
        # row stride; junk columns only ever feed cropped output positions).
        s2 = stack_taps(mid, la_out, 1).astype(jnp.bfloat16)    # (9*n_mid_pad, la_out)
        out2 = jnp.dot(w2, s2, preferred_element_type=jnp.float32) + b2

        # Channel concat (dilated block | stage-2 block): both stores start on
        # a sublane-tile boundary and are lane-dense (multiple of 128 lanes).
        o_ref[b, 0:n_out_d_pad, :] = out_d
        o_ref[b, n_out_d_pad:, :] = out2


# ---------------------------------------------------------------------------
# Wrapper / weight fusion
# ---------------------------------------------------------------------------
def _fuse_stage(params, hname, vname, fname, cin_pad, cout_pad):
    """Fuse (1,3)/(3,1)/(3,3) kernels into one padded 3x3 kernel (output order
    h, v, f) and pack it into a (cout_pad, 9*cin_pad) tap-major matmul weight."""
    h_w, h_b = params[hname]
    v_w, v_b = params[vname]
    f_w, f_b = params[fname]
    n_dir = h_w.shape[-1]
    n_full = f_w.shape[-1]
    cin = h_w.shape[2]

    w = jnp.zeros((3, 3, cin_pad, cout_pad), jnp.float32)
    w = w.at[1, :, :cin, :n_dir].set(h_w[0])                       # (1,3) centre row
    w = w.at[:, 1, :cin, n_dir:2 * n_dir].set(v_w[:, 0])           # (3,1) centre col
    w = w.at[:, :, :cin, 2 * n_dir:2 * n_dir + n_full].set(f_w)    # full 3x3

    b = jnp.zeros((cout_pad,), jnp.float32)
    b = b.at[:2 * n_dir + n_full].set(jnp.concatenate([h_b, v_b, f_b]))

    # (3,3,ci,co) -> (co, 9*ci): column index = (ky*3+kx)*ci + i.
    wp = jnp.transpose(w, (3, 0, 1, 2)).reshape(cout_pad, 9 * cin_pad)
    return wp, b


def dir_full_dil(x, params, *, n_dir, n_full, n_dir_dil, n_full_dil):
    N, cin, H, W = x.shape
    n_mid = 2 * n_dir + n_full
    n_out2 = n_mid
    n_out_d = 2 * n_dir_dil + n_full_dil
    Ho, Wo = H - 4, W - 4

    # Sublane-padded channel counts.
    cin_pad = _round_up(cin, 8)
    n_mid_pad = _round_up(n_mid, 8)
    n_out2_pad = _round_up(n_out2, 8)
    n_out_d_pad = _round_up(n_out_d, 8)
    c_out_pad = n_out_d_pad + n_out2_pad

    # Lane-dense row-major slab lengths (all multiples of 128; row stride = W).
    la_out = _round_up(Ho * W, 128)                       # output rows slab
    la1 = _round_up(la_out + 2 * (W + 1), 128)            # stage-1 slab (feeds stage 2)
    lx = _round_up(max(la1 + 2 * (W + 1),                 # stage-1 tap reach into x
                       la_out + 4 * (W + 1),              # dilated tap reach into x
                       H * W), 128)

    k1 = 9 * cin_pad
    k2 = 9 * n_mid_pad
    kmax = max(k1, k2)
    rows = n_out2_pad + n_mid_pad + n_out_d_pad

    # Input: flattened row-major, channels padded to 8, lanes zero-padded.
    # (Padded lanes/rows only ever feed cropped-away output positions.)
    x_flat = jnp.zeros((N, cin_pad, lx), jnp.float32)
    x_flat = x_flat.at[:, :cin, :H * W].set(
        x.astype(jnp.float32).reshape(N, cin, H * W))

    # Fused + tap-packed weights in a single slab: [stage2 | stage1 | dilated].
    w2p, b2p = _fuse_stage(params, "h2", "v2", "f2", n_mid_pad, n_out2_pad)
    w1p, b1p = _fuse_stage(params, "h1", "v1", "f1", cin_pad, n_mid_pad)
    wdp, bdp = _fuse_stage(params, "hd", "vd", "fd", cin_pad, n_out_d_pad)
    wslab = jnp.zeros((rows, kmax), jnp.float32)
    wslab = wslab.at[:n_out2_pad, :k2].set(w2p)
    wslab = wslab.at[n_out2_pad:n_out2_pad + n_mid_pad, :k1].set(w1p)
    wslab = wslab.at[n_out2_pad + n_mid_pad:, :k1].set(wdp)
    bslab = jnp.concatenate([b2p, b1p, bdp]).reshape(rows, 1)

    b_tile = _pick_b_tile(N)
    grid = (N // b_tile,)

    kernel = functools.partial(
        dir_full_dil_kernel, row_w=W, la1=la1, la_out=la_out, cin_pad=cin_pad,
        n_mid_pad=n_mid_pad, n_out_d_pad=n_out_d_pad, n_out2_pad=n_out2_pad,
        b_tile=b_tile)

    out_flat = pl.pallas_call(
        kernel,
        out_shape=jax.ShapeDtypeStruct((N, c_out_pad, la_out), jnp.float32),
        grid=grid,
        in_specs=[
            pl.BlockSpec((b_tile, cin_pad, lx), lambda g: (g, 0, 0)),
            pl.BlockSpec((rows, kmax), lambda g: (0, 0)),
            pl.BlockSpec((rows, 1), lambda g: (0, 0)),
        ],
        out_specs=pl.BlockSpec((b_tile, c_out_pad, la_out), lambda g: (g, 0, 0)),
        compiler_params=pltpu.CompilerParams(
            dimension_semantics=("parallel",)),
    )(x_flat, wslab, bslab)

    # Drop lane padding + the W-Wo junk columns, then pick the real channels in
    # reference order (h_d, v_d, f_d, h, v, f) = [dilated block | stage-2 block].
    out = out_flat[:, :, :Ho * W].reshape(N, c_out_pad, Ho, W)[:, :, :, :Wo]
    return jnp.concatenate(
        [out[:, :n_out_d], out[:, n_out_d_pad:n_out_d_pad + n_out2]], axis=1)


# ---------------------------------------------------------------------------
# Parameters & pure-JAX reference
# ---------------------------------------------------------------------------
def init_params(key, cin, n_dir, n_full, n_dir_dil, n_full_dil):
    """Deterministic synthetic params; weights stored as (kh, kw, cin, cout)."""
    n_mid = 2 * n_dir + n_full
    layer_defs = [
        ("h1", cin, n_dir, 1, 3), ("v1", cin, n_dir, 3, 1), ("f1", cin, n_full, 3, 3),
        ("h2", n_mid, n_dir, 1, 3), ("v2", n_mid, n_dir, 3, 1), ("f2", n_mid, n_full, 3, 3),
        ("hd", cin, n_dir_dil, 1, 3), ("vd", cin, n_dir_dil, 3, 1), ("fd", cin, n_full_dil, 3, 3),
    ]
    params = {}
    for name, ci, co, kh, kw in layer_defs:
        key, kw_key, kb_key = jax.random.split(key, 3)
        w = 0.2 * jax.random.normal(kw_key, (kh, kw, ci, co), jnp.float32)
        b = 0.1 * jax.random.normal(kb_key, (co,), jnp.float32)
        params[name] = (w, b)
    return params


def reference_forward(x, params):
    """Pure-JAX reference mirroring the PyTorch forward (NCHW).

    Conv operands are cast to bf16 with f32 accumulation — the same numerics
    the Pallas kernel uses on the MXU — so the comparison stays tight."""
    dn = ("NCHW", "HWIO", "NCHW")

    def conv(z, name, dil=1):
        w, b = params[name]
        y = lax.conv_general_dilated(
            z.astype(jnp.bfloat16), w.astype(jnp.bfloat16), (1, 1), "VALID",
            rhs_dilation=(dil, dil), dimension_numbers=dn,
            preferred_element_type=jnp.float32)
        return y + b.reshape(1, -1, 1, 1)

    h_d = conv(x, "hd", 2)[:, :, 2:-2]
    v_d = conv(x, "vd", 2)[:, :, :, 2:-2]
    f_d = conv(x, "fd", 2)
    h = conv(x, "h1")[:, :, 1:-1]
    v = conv(x, "v1")[:, :, :, 1:-1]
    f = conv(x, "f1")
    xm = jax.nn.softplus(jnp.concatenate((h, v, f), axis=1))
    h = conv(xm, "h2")[:, :, 1:-1]
    v = conv(xm, "v2")[:, :, :, 1:-1]
    f = conv(xm, "f2")
    return jnp.concatenate((h_d, v_d, f_d, h, v, f), axis=1)


if __name__ == "__main__":
    key = jax.random.PRNGKey(0)
    k_x, k_p = jax.random.split(key)

    N, CIN, H, W = 2, 4, 16, 16
    N_DIR, N_FULL, N_DIR_DIL, N_FULL_DIL = 3, 4, 2, 3
    C_OUT = 2 * N_DIR + N_FULL + 2 * N_DIR_DIL + N_FULL_DIL  # 17

    x = jax.random.normal(k_x, (N, CIN, H, W), jnp.float32)
    params = init_params(k_p, CIN, N_DIR, N_FULL, N_DIR_DIL, N_FULL_DIL)

    out = dir_full_dil(x, params, n_dir=N_DIR, n_full=N_FULL,
                       n_dir_dil=N_DIR_DIL, n_full_dil=N_FULL_DIL)
    out = jax.block_until_ready(out)
    assert out.shape == (N, C_OUT, H - 4, W - 4), out.shape

    ref = jax.block_until_ready(reference_forward(x, params))
    max_err = float(jnp.max(jnp.abs(out - ref)))
    assert jnp.allclose(out, ref, atol=5e-3, rtol=5e-3), max_err

    print("KERNEL_OK")
</pallas_src>

<mosaic_0001>
module attributes {stable_mosaic.version = 11 : i64} {
  func.func @dir_full_dil_kernel(%arg0: i32, %arg1: memref<1x8x512xf32, #tpu.memory_space<vmem>>, %arg2: memref<40x144xf32, #tpu.memory_space<vmem>>, %arg3: memref<40x1xf32, #tpu.memory_space<vmem>>, %arg4: memref<1x24x256xf32, #tpu.memory_space<vmem>>) attributes {dimension_semantics = [#tpu.dimension_semantics<parallel>], iteration_bounds = array<i64: 2>, scalar_prefetch = 0 : i64, scratch_operands = 0 : i64, tpu.core_type = #tpu.core_type<tc>, window_params = [{transform_indices = @transform_0, window_bounds = array<i64: 1, 8, 512>}, {pipeline_mode = #tpu.pipeline_mode<synchronous>, transform_indices = @transform_1, window_bounds = array<i64: 40, 144>}, {pipeline_mode = #tpu.pipeline_mode<synchronous>, transform_indices = @transform_2, window_bounds = array<i64: 40, 1>}, {transform_indices = @transform_3, window_bounds = array<i64: 1, 24, 256>}]} {
    %c0 = arith.constant 0 : index
    %c0_0 = arith.constant 0 : index
    %0 = vector.load %arg2[%c0, %c0_0] : memref<40x144xf32, #tpu.memory_space<vmem>>, vector<40x144xf32>
    %c0_1 = arith.constant 0 : index
    %c0_2 = arith.constant 0 : index
    %1 = vector.load %arg3[%c0_1, %c0_2] : memref<40x1xf32, #tpu.memory_space<vmem>>, vector<40x1xf32>
    %2 = vector.extract_strided_slice %0 {offsets = [0, 0], sizes = [16, 144], strides = [1, 1]} : vector<40x144xf32> to vector<16x144xf32>
    %3 = arith.truncf %2 : vector<16x144xf32> to vector<16x144xbf16>
    %4 = vector.extract_strided_slice %1 {offsets = [0, 0], sizes = [16, 1], strides = [1, 1]} : vector<40x1xf32> to vector<16x1xf32>
    %5 = vector.extract_strided_slice %0 {offsets = [16, 0], sizes = [16, 72], strides = [1, 1]} : vector<40x144xf32> to vector<16x72xf32>
    %6 = arith.truncf %5 : vector<16x72xf32> to vector<16x72xbf16>
    %7 = vector.extract_strided_slice %1 {offsets = [16, 0], sizes = [16, 1], strides = [1, 1]} : vector<40x1xf32> to vector<16x1xf32>
    %8 = vector.extract_strided_slice %0 {offsets = [32, 0], sizes = [8, 72], strides = [1, 1]} : vector<40x144xf32> to vector<8x72xf32>
    %9 = arith.truncf %8 : vector<8x72xf32> to vector<8x72xbf16>
    %10 = vector.extract_strided_slice %1 {offsets = [32, 0], sizes = [8, 1], strides = [1, 1]} : vector<40x1xf32> to vector<8x1xf32>
    %c0_3 = arith.constant 0 : index
    %c0_4 = arith.constant 0 : index
    %c0_5 = arith.constant 0 : index
    %11 = vector.load %arg1[%c0_3, %c0_4, %c0_5] : memref<1x8x512xf32, #tpu.memory_space<vmem>>, vector<1x8x512xf32>
    %12 = vector.shape_cast %11 : vector<1x8x512xf32> to vector<8x512xf32>
    %13 = vector.extract_strided_slice %12 {offsets = [0, 0], sizes = [8, 256], strides = [1, 1]} : vector<8x512xf32> to vector<8x256xf32>
    %14 = vector.extract_strided_slice %12 {offsets = [0, 2], sizes = [8, 256], strides = [1, 1]} : vector<8x512xf32> to vector<8x256xf32>
    %15 = vector.extract_strided_slice %12 {offsets = [0, 4], sizes = [8, 256], strides = [1, 1]} : vector<8x512xf32> to vector<8x256xf32>
    %16 = vector.extract_strided_slice %12 {offsets = [0, 32], sizes = [8, 256], strides = [1, 1]} : vector<8x512xf32> to vector<8x256xf32>
    %17 = vector.extract_strided_slice %12 {offsets = [0, 34], sizes = [8, 256], strides = [1, 1]} : vector<8x512xf32> to vector<8x256xf32>
    %18 = vector.extract_strided_slice %12 {offsets = [0, 36], sizes = [8, 256], strides = [1, 1]} : vector<8x512xf32> to vector<8x256xf32>
    %19 = vector.extract_strided_slice %12 {offsets = [0, 64], sizes = [8, 256], strides = [1, 1]} : vector<8x512xf32> to vector<8x256xf32>
    %20 = vector.extract_strided_slice %12 {offsets = [0, 66], sizes = [8, 256], strides = [1, 1]} : vector<8x512xf32> to vector<8x256xf32>
    %21 = vector.extract_strided_slice %12 {offsets = [0, 68], sizes = [8, 256], strides = [1, 1]} : vector<8x512xf32> to vector<8x256xf32>
    %22 = tpu.concatenate %13, %14, %15, %16, %17, %18, %19, %20, %21 in 0 : vector<8x256xf32>, vector<8x256xf32>, vector<8x256xf32>, vector<8x256xf32>, vector<8x256xf32>, vector<8x256xf32>, vector<8x256xf32>, vector<8x256xf32>, vector<8x256xf32> -> vector<72x256xf32>
    %23 = arith.truncf %22 : vector<72x256xf32> to vector<72x256xbf16>
    %cst = arith.constant dense<0.000000e+00> : vector<8x256xf32>
    %24 = tpu.matmul %9, %23, %cst {dimension_numbers = #tpu.dot_dimension_numbers<[1], [0], [0], [1], [0, 0, 1, 1], [], []>} : vector<8x72xbf16>, vector<72x256xbf16>, vector<8x256xf32> -> vector<8x256xf32>
    %25 = vector.broadcast %10 : vector<8x1xf32> to vector<8x256xf32>
    %26 = arith.addf %24, %25 : vector<8x256xf32>
    %27 = vector.extract_strided_slice %12 {offsets = [0, 0], sizes = [8, 384], strides = [1, 1]} : vector<8x512xf32> to vector<8x384xf32>
    %28 = vector.extract_strided_slice %12 {offsets = [0, 1], sizes = [8, 384], strides = [1, 1]} : vector<8x512xf32> to vector<8x384xf32>
    %29 = vector.extract_strided_slice %12 {offsets = [0, 2], sizes = [8, 384], strides = [1, 1]} : vector<8x512xf32> to vector<8x384xf32>
    %30 = vector.extract_strided_slice %12 {offsets = [0, 16], sizes = [8, 384], strides = [1, 1]} : vector<8x512xf32> to vector<8x384xf32>
    %31 = vector.extract_strided_slice %12 {offsets = [0, 17], sizes = [8, 384], strides = [1, 1]} : vector<8x512xf32> to vector<8x384xf32>
    %32 = vector.extract_strided_slice %12 {offsets = [0, 18], sizes = [8, 384], strides = [1, 1]} : vector<8x512xf32> to vector<8x384xf32>
    %33 = vector.extract_strided_slice %12 {offsets = [0, 32], sizes = [8, 384], strides = [1, 1]} : vector<8x512xf32> to vector<8x384xf32>
    %34 = vector.extract_strided_slice %12 {offsets = [0, 33], sizes = [8, 384], strides = [1, 1]} : vector<8x512xf32> to vector<8x384xf32>
    %35 = vector.extract_strided_slice %12 {offsets = [0, 34], sizes = [8, 384], strides = [1, 1]} : vector<8x512xf32> to vector<8x384xf32>
    %36 = tpu.concatenate %27, %28, %29, %30, %31, %32, %33, %34, %35 in 0 : vector<8x384xf32>, vector<8x384xf32>, vector<8x384xf32>, vector<8x384xf32>, vector<8x384xf32>, vector<8x384xf32>, vector<8x384xf32>, vector<8x384xf32>, vector<8x384xf32> -> vector<72x384xf32>
    %37 = arith.truncf %36 : vector<72x384xf32> to vector<72x384xbf16>
    %cst_6 = arith.constant dense<0.000000e+00> : vector<16x384xf32>
    %38 = tpu.matmul %6, %37, %cst_6 {dimension_numbers = #tpu.dot_dimension_numbers<[1], [0], [0], [1], [0, 0, 1, 1], [], []>} : vector<16x72xbf16>, vector<72x384xbf16>, vector<16x384xf32> -> vector<16x384xf32>
    %39 = vector.broadcast %7 : vector<16x1xf32> to vector<16x384xf32>
    %40 = arith.addf %38, %39 : vector<16x384xf32>
    %cst_7 = arith.constant 0.000000e+00 : f32
    %41 = vector.broadcast %cst_7 : f32 to vector<16x384xf32>
    %42 = arith.maximumf %40, %41 : vector<16x384xf32>
    %43 = vector.broadcast %cst_7 : f32 to vector<16x384xf32>
    %44 = arith.subf %40, %43 : vector<16x384xf32>
    %45 = arith.cmpf one, %44, %44 : vector<16x384xf32>
    %46 = vector.broadcast %cst_7 : f32 to vector<16x384xf32>
    %47 = arith.addf %40, %46 : vector<16x384xf32>
    %48 = math.absf %44 : vector<16x384xf32>
    %cst_8 = arith.constant 0.000000e+00 : f32
    %49 = vector.broadcast %cst_8 : f32 to vector<16x384xf32>
    %50 = arith.subf %49, %48 : vector<16x384xf32>
    %51 = math.exp %50 : vector<16x384xf32>
    %52 = math.log1p %51 : vector<16x384xf32>
    %53 = arith.addf %42, %52 : vector<16x384xf32>
    %54 = arith.select %45, %47, %53 : vector<16x384xi1>, vector<16x384xf32>
    %55 = vector.extract_strided_slice %54 {offsets = [0, 0], sizes = [16, 256], strides = [1, 1]} : vector<16x384xf32> to vector<16x256xf32>
    %56 = vector.extract_strided_slice %54 {offsets = [0, 1], sizes = [16, 256], strides = [1, 1]} : vector<16x384xf32> to vector<16x256xf32>
    %57 = vector.extract_strided_slice %54 {offsets = [0, 2], sizes = [16, 256], strides = [1, 1]} : vector<16x384xf32> to vector<16x256xf32>
    %58 = vector.extract_strided_slice %54 {offsets = [0, 16], sizes = [16, 256], strides = [1, 1]} : vector<16x384xf32> to vector<16x256xf32>
    %59 = vector.extract_strided_slice %54 {offsets = [0, 17], sizes = [16, 256], strides = [1, 1]} : vector<16x384xf32> to vector<16x256xf32>
    %60 = vector.extract_strided_slice %54 {offsets = [0, 18], sizes = [16, 256], strides = [1, 1]} : vector<16x384xf32> to vector<16x256xf32>
    %61 = vector.extract_strided_slice %54 {offsets = [0, 32], sizes = [16, 256], strides = [1, 1]} : vector<16x384xf32> to vector<16x256xf32>
    %62 = vector.extract_strided_slice %54 {offsets = [0, 33], sizes = [16, 256], strides = [1, 1]} : vector<16x384xf32> to vector<16x256xf32>
    %63 = vector.extract_strided_slice %54 {offsets = [0, 34], sizes = [16, 256], strides = [1, 1]} : vector<16x384xf32> to vector<16x256xf32>
    %64 = tpu.concatenate %55, %56, %57, %58, %59, %60, %61, %62, %63 in 0 : vector<16x256xf32>, vector<16x256xf32>, vector<16x256xf32>, vector<16x256xf32>, vector<16x256xf32>, vector<16x256xf32>, vector<16x256xf32>, vector<16x256xf32>, vector<16x256xf32> -> vector<144x256xf32>
    %65 = arith.truncf %64 : vector<144x256xf32> to vector<144x256xbf16>
    %cst_9 = arith.constant dense<0.000000e+00> : vector<16x256xf32>
    %66 = tpu.matmul %3, %65, %cst_9 {dimension_numbers = #tpu.dot_dimension_numbers<[1], [0], [0], [1], [0, 0, 1, 1], [], []>} : vector<16x144xbf16>, vector<144x256xbf16>, vector<16x256xf32> -> vector<16x256xf32>
    %67 = vector.broadcast %4 : vector<16x1xf32> to vector<16x256xf32>
    %68 = arith.addf %66, %67 : vector<16x256xf32>
    %c0_10 = arith.constant 0 : index
    %c0_11 = arith.constant 0 : index
    %c0_12 = arith.constant 0 : index
    %69 = vector.load %arg4[%c0_10, %c0_11, %c0_12] : memref<1x24x256xf32, #tpu.memory_space<vmem>>, vector<1x8x256xf32>
    %70 = vector.shape_cast %69 : vector<1x8x256xf32> to vector<8x256xf32>
    %71 = vector.shape_cast %26 : vector<8x256xf32> to vector<1x8x256xf32>
    tpu.vector_store %arg4[%c0_10, %c0_11, %c0_12], %71 {strides = array<i32>} : memref<1x24x256xf32, #tpu.memory_space<vmem>>, vector<1x8x256xf32>,
    %c0_13 = arith.constant 0 : index
    %c8 = arith.constant 8 : index
    %c0_14 = arith.constant 0 : index
    %72 = vector.load %arg4[%c0_13, %c8, %c0_14] : memref<1x24x256xf32, #tpu.memory_space<vmem>>, vector<1x16x256xf32>
    %73 = vector.shape_cast %72 : vector<1x16x256xf32> to vector<16x256xf32>
    %74 = vector.shape_cast %68 : vector<16x256xf32> to vector<1x16x256xf32>
    tpu.vector_store %arg4[%c0_13, %c8, %c0_14], %74 {strides = array<i32>} : memref<1x24x256xf32, #tpu.memory_space<vmem>>, vector<1x16x256xf32>,
    return
  }
  func.func @transform_0(%arg0: i32) -> (i32, i32, i32) {
    %c0_i32 = arith.constant 0 : i32
    %c0_i32_0 = arith.constant 0 : i32
    %c0_i32_1 = arith.constant 0 : i32
    return %arg0, %c0_i32, %c0_i32_0 : i32, i32, i32
  }
  func.func @transform_1(%arg0: i32) -> (i32, i32) {
    %c0_i32 = arith.constant 0 : i32
    %c0_i32_0 = arith.constant 0 : i32
    %c0_i32_1 = arith.constant 0 : i32
    return %c0_i32, %c0_i32_0 : i32, i32
  }
  func.func @transform_2(%arg0: i32) -> (i32, i32) {
    %c0_i32 = arith.constant 0 : i32
    %c0_i32_0 = arith.constant 0 : i32
    %c0_i32_1 = arith.constant 0 : i32
    return %c0_i32, %c0_i32_0 : i32, i32
  }
  func.func @transform_3(%arg0: i32) -> (i32, i32, i32) {
    %c0_i32 = arith.constant 0 : i32
    %c0_i32_0 = arith.constant 0 : i32
    %c0_i32_1 = arith.constant 0 : i32
    return %arg0, %c0_i32, %c0_i32_0 : i32, i32, i32
  }
}

</mosaic_0001>

<llo_original>
// kernel: tpu_custom_call.1
$region0: #{tpu_custom_call.1}
  #allocation0 [shape = 'u32[]', space=smem, size = 0x4, offset = 0x4, fixed_abs, tag = 'smem constant byte address 0x4 - core index']
  #allocation1 [shape = 'u32[144,128]{1,0:T(1,128)}', space=vmem, size = 0x12000, scoped, tag = 'internal scratch']
  %s0 = inlined_call_operand.hbm [shape: f32[2,8,512], index: 0, kind: input, shape index: {}]
  %s1 = inlined_call_operand.hbm [shape: f32[40,144], index: 1, kind: input, shape index: {}]
  %s2 = inlined_call_operand.vmem [shape: f32[40,1], index: 2, kind: input, shape index: {}]
  %s3 = inlined_call_operand.hbm [shape: f32[2,24,256], index: 3, kind: output, shape index: {}]
  %s4 = sld [smem:[#allocation0]]
  $region53: #{tpu_custom_call.1} parent=0
    _
  %s6 = ssub.s32 1, %s4
  %s7 = scalar_select 0, %s6, %s4
  $region1: #{tpu_custom_call.1} parent=0
    #allocation2 [shape = 'u8[32768]{0}', space=vmem, size = 0x8000, scoped, tag = 'input window, operand 0']
    #allocation3 [shape = 's32[2]{0}', space=sflag, size = 0x8, scoped, tag = 'scoped memory for tpu_custom_call.1']
    #allocation4 [shape = 's32[2]{0}', space=sflag, size = 0x8, scoped, tag = 'scoped memory for tpu_custom_call.1']
    #allocation5 [shape = 'u8[40960]{0}', space=vmem, size = 0xa000, scoped, tag = 'input window, operand 1, single buffered']
    #allocation6 [shape = 's32[1]{0}', space=sflag, size = 0x4, scoped, tag = 'scoped memory for tpu_custom_call.1']
    #allocation7 [shape = 'u8[49152]{0}', space=vmem, size = 0xc000, scoped, tag = 'output window, operand 0']
    %8 = vsyncpa [#allocation3], 0
    %s9 = scalar_lea.sflag [#allocation3], 1
    %10 = vsyncpa %s9, 0
    %11 = vsyncpa [#allocation6], 0
    %12 = vsyncpa [#allocation4], 0
    %s13 = scalar_lea.sflag [#allocation4], 1
    %14 = vsyncpa %s13, 0
    loop: start=0, step=1, limit=4
    $region2: #{tpu_custom_call.1} parent=1 // loop_pre_header
      _
    $region3: #{tpu_custom_call.1} parent=1 // loop_header
      %s16 = sphi 0, %s20
      %p17 = scmp.ge.s32.totalorder %s16, 4
      %s26 = sphi 0, %s28
      %s29 = sphi 0, %s26
      %s30 = sphi 0, %s29
      %s46 = sphi 0, %s30
      %s50 = sphi 0, %s50
      %s52 = sphi 0, %s50
      %s53 = sphi 0, %s52
      %s67 = sphi 0, %s53
      %s71 = sphi 0, %s71
      %s73 = sphi 0, %s71
      %s74 = sphi 0, %s73
      %s88 = sphi 0, %s74
      %s94 = sphi 0, %s96
      %s97 = sphi 0, %s94
      %s98 = sphi 0, %s97
      %s114 = sphi 0, %s98
    $region4: #{tpu_custom_call.1} parent=1 // loop_header_branch
      %19 = sbr.rel (%p17) target = $region8
    $region5: #{tpu_custom_call.1} parent=1 // loop_body
      %s21 = ssub.s32 %s16, 1
      %s22 = ssub.s32 %s16, 2
      %s23 = sadd.s32 %s16, 1
      %s24 = ssub.s32 %s16, %s23
      %p25 = scmp.eq.s32.totalorder %s24, 0
      %s27 = sadd.s32 %s26, 1
      %s28 = scalar_select %p25, %s26, %s27
      %p31 = pneg %p25
      %p32 = scmp.eq.s32.totalorder %s16, 1
      %p33 = por %p31, %p32
      %p34 = scmp.ne.s32.totalorder %s26, %s29
      %p35 = scmp.eq.s32.totalorder %s16, 0
      %p36 = por %p34, %p35
      %p37 = scmp.ne.s32.totalorder %s26, %s29
      %p38 = scmp.eq.s32.totalorder %s21, 1
      %p39 = por %p37, %p38
      %p40 = scmp.ne.s32.totalorder %s29, %s30
      %p41 = scmp.eq.s32.totalorder %s21, 0
      %p42 = por %p40, %p41
      %p43 = scmp.ne.s32.totalorder %s29, %s30
      %p44 = scmp.eq.s32.totalorder %s22, 1
      %p45 = por %p43, %p44
      %p47 = scmp.ne.s32.totalorder %s30, %s46
      %p48 = scmp.eq.s32.totalorder %s22, 0
      %p49 = por %p47, %p48
      %s51 = sadd.s32 %s50, 1
      %p54 = scmp.eq.s32.totalorder %s16, 1
      %p55 = scmp.ne.s32.totalorder %s50, %s52
      %p56 = scmp.eq.s32.totalorder %s16, 0
      %p57 = por %p55, %p56
      %p58 = scmp.ne.s32.totalorder %s50, %s52
      %p59 = scmp.eq.s32.totalorder %s21, 1
      %p60 = por %p58, %p59
      %p61 = scmp.ne.s32.totalorder %s52, %s53
      %p62 = scmp.eq.s32.totalorder %s21, 0
      %p63 = por %p61, %p62
      %p64 = scmp.ne.s32.totalorder %s52, %s53
      %p65 = scmp.eq.s32.totalorder %s22, 1
      %p66 = por %p64, %p65
      %p68 = scmp.ne.s32.totalorder %s53, %s67
      %p69 = scmp.eq.s32.totalorder %s22, 0
      %p70 = por %p68, %p69
      %s72 = sadd.s32 %s71, 1
      %p75 = scmp.eq.s32.totalorder %s16, 1
      %p76 = scmp.ne.s32.totalorder %s71, %s73
      %p77 = scmp.eq.s32.totalorder %s16, 0
      %p78 = por %p76, %p77
      %p79 = scmp.ne.s32.totalorder %s71, %s73
      %p80 = scmp.eq.s32.totalorder %s21, 1
      %p81 = por %p79, %p80
      %p82 = scmp.ne.s32.totalorder %s73, %s74
      %p83 = scmp.eq.s32.totalorder %s21, 0
      %p84 = por %p82, %p83
      %p85 = scmp.ne.s32.totalorder %s73, %s74
      %p86 = scmp.eq.s32.totalorder %s22, 1
      %p87 = por %p85, %p86
      %p89 = scmp.ne.s32.totalorder %s74, %s88
      %p90 = scmp.eq.s32.totalorder %s22, 0
      %p91 = por %p89, %p90
      %s92 = ssub.s32 %s16, %s23
      %p93 = scmp.eq.s32.totalorder %s92, 0
      %s95 = sadd.s32 %s94, 1
      %s96 = scalar_select %p93, %s94, %s95
      %p99 = pneg %p93
      %p100 = scmp.eq.s32.totalorder %s16, 1
      %p101 = por %p99, %p100
      %p102 = scmp.ne.s32.totalorder %s94, %s97
      %p103 = scmp.eq.s32.totalorder %s16, 0
      %p104 = por %p102, %p103
      %p105 = scmp.ne.s32.totalorder %s94, %s97
      %p106 = scmp.eq.s32.totalorder %s21, 1
      %p107 = por %p105, %p106
      %p108 = scmp.ne.s32.totalorder %s97, %s98
      %p109 = scmp.eq.s32.totalorder %s21, 0
      %p110 = por %p108, %p109
      %p111 = scmp.ne.s32.totalorder %s97, %s98
      %p112 = scmp.eq.s32.totalorder %s22, 1
      %p113 = por %p111, %p112
      %p115 = scmp.ne.s32.totalorder %s98, %s114
      %p116 = scmp.eq.s32.totalorder %s22, 0
      %p117 = por %p115, %p116
      %p118 = scmp.le.s32.totalorder 1, %s16
      %p119 = scmp.lt.s32.totalorder %s16, 3
      %p120 = pnand %p118, %p119
      %p121 = pneg %p120
      // Predicated region
      $region9: #{tpu_custom_call.1} parent=5 // pred_check
        _
      $region10: #{tpu_custom_call.1} parent=5 // pred_check_branch
        %123 = sbr.rel (%p120) target = $region12
      $region11: #{tpu_custom_call.1} parent=5 // pred_region
        %s124 = ssub.s32 %s16, 1
        // Predicated region
        $region13: #{tpu_custom_call.1} parent=11 // pred_check
          %p125 = pneg %p63
        $region14: #{tpu_custom_call.1} parent=11 // pred_check_branch
          %127 = sbr.rel (%p125) target = $region16
        $region15: #{tpu_custom_call.1} parent=11 // pred_region
          %s129 = ssub.s32 1280, 1280
          %130 = vsyncadd [#allocation6], %s129
          %s131 = sshll.u32 [#allocation5], 4
          %s132 = int_to_ptr.vmem [resolvable:$true] %s131
          %137 = dma.hbm_to_vmem [thread:$0]  %s1, 1280, %s132, [#allocation6], 256, 256, 16
        $region16: #{tpu_custom_call.1} parent=11 // pred_fallthru
          _
        // Predicated region
        $region17: #{tpu_custom_call.1} parent=11 // pred_check
          %p138 = pneg %p84
        $region18: #{tpu_custom_call.1} parent=11 // pred_check_branch
          %140 = sbr.rel (%p138) target = $region20
        $region19: #{tpu_custom_call.1} parent=11 // pred_region
          _
        $region20: #{tpu_custom_call.1} parent=11 // pred_fallthru
          _
      $region12: #{tpu_custom_call.1} parent=5 // pred_fallthru
        _
      %p141 = scmp.lt.s32.totalorder %s16, 2
      // Predicated region
      $region21: #{tpu_custom_call.1} parent=5 // pred_check
        %p142 = pneg %p141
      $region22: #{tpu_custom_call.1} parent=5 // pred_check_branch
        %144 = sbr.rel (%p142) target = $region24
      $region23: #{tpu_custom_call.1} parent=5 // pred_region
        // Predicated region
        $region25: #{tpu_custom_call.1} parent=23 // pred_check
          %p145 = pneg %p36
        $region26: #{tpu_custom_call.1} parent=23 // pred_check_branch
          %147 = sbr.rel (%p145) target = $region28
        $region27: #{tpu_custom_call.1} parent=23 // pred_region
          %s148 = sand.u32 %s26, 1
          %s149 = scalar_lea.sflag [#allocation3], %s148
          %s150 = sand.u32 %s26, 1
          %s151 = smul.addr %s150, 32
          %s152 = scalar_lea.vmem [#allocation2], %s151
          %s154 = ssub.s32 512, 512
          %155 = vsyncadd %s149, %s154
          %s156 = smul.addr %s16, 4
          %s157 = smul.addr %s156, 128
          %s158 = scalar_lea.hbm %s0, %s157
          %s160 = sshll.u32 %s152, 4
          %s161 = int_to_ptr.vmem [resolvable:$true] %s160
          %163 = dma.hbm_to_vmem [thread:$0]  %s158, 512, %s161, %s149
        $region28: #{tpu_custom_call.1} parent=23 // pred_fallthru
          _
      $region24: #{tpu_custom_call.1} parent=5 // pred_fallthru
        _
      %p164 = scmp.le.s32.totalorder 1, %s16
      %p165 = scmp.lt.s32.totalorder %s16, 3
      %p166 = pnand %p164, %p165
      %p167 = pneg %p166
      // Predicated region
      $region29: #{tpu_custom_call.1} parent=5 // pred_check
        _
      $region30: #{tpu_custom_call.1} parent=5 // pred_check_branch
        %169 = sbr.rel (%p166) target = $region32
      $region31: #{tpu_custom_call.1} parent=5 // pred_region
        %s170 = ssub.s32 %s16, 1
        %s171 = sand.u32 %s29, 1
        %s172 = scalar_lea.sflag [#allocation3], %s171
        %s173 = sand.u32 %s29, 1
        %s174 = smul.addr %s173, 32
        %s175 = scalar_lea.vmem [#allocation2], %s174
        // Predicated region
        $region33: #{tpu_custom_call.1} parent=31 // pred_check
          %p176 = pneg %p42
        $region34: #{tpu_custom_call.1} parent=31 // pred_check_branch
          %178 = sbr.rel (%p176) target = $region36
        $region35: #{tpu_custom_call.1} parent=31 // pred_region
          %179 = dma.done %s172, 512
        $region36: #{tpu_custom_call.1} parent=31 // pred_fallthru
          _
        // Predicated region
        $region37: #{tpu_custom_call.1} parent=31 // pred_check
          %p180 = pneg %p63
        $region38: #{tpu_custom_call.1} parent=31 // pred_check_branch
          %182 = sbr.rel (%p180) target = $region40
        $region39: #{tpu_custom_call.1} parent=31 // pred_region
          %183 = dma.done [#allocation6], 1280
        $region40: #{tpu_custom_call.1} parent=31 // pred_fallthru
          _
        %s184 = sand.u32 %s29, 1
        %s185 = scalar_lea.sflag [#allocation3], %s184
        %s186 = sand.u32 %s29, 1
        %s187 = smul.addr %s186, 32
        %s188 = scalar_lea.vmem [#allocation2], %s187
        %p189 = pneg %p42
        %p190 = pneg %p39
        %p191 = pneg %p63
        %p192 = pneg %p60
        %p193 = pneg %p84
        %p194 = pneg %p81
        %p195 = pneg %p110
        %p196 = pneg %p107
        %s197 = sand.u32 %s97, 1
        %s198 = scalar_lea.sflag [#allocation4], %s197
        %s199 = sand.u32 %s97, 1
        %s200 = smul.addr %s199, 48
        %s201 = scalar_lea.vmem [#allocation7], %s200
        %v203 = vld [vmem:[#allocation5] sm:$0xff]
        %v204 = vld [vmem:[#allocation5 + $0x8] sm:$0xff]
        %v205 = vld [vmem:[#allocation5 + $0x10] sm:$0xff]
        %v206 = vld [vmem:[#allocation5 + $0x18] sm:$0xff]
        %v207 = vld [vmem:[#allocation5 + $0x20] sm:$0xff]
        %v208 = vld [vmem:[#allocation5 + $0x30] sm:$0xff]
        %v209 = vld [vmem:[#allocation5 + $0x40] sm:$0xff]
        %v210 = vld [vmem:[%s2] sm:$0xff]
        %v211 = vld [vmem:[%s2 + $0x8] sm:$0xff]
        %v212 = vld [vmem:[%s2 + $0x10] sm:$0xff]
        %v213 = vld [vmem:[%s2 + $0x18] sm:$0xff]
        %v214 = vld [vmem:[%s2 + $0x20] sm:$0xff]
        %v215 = vpack.c.bf16 %v205, %v203
        %v216 = vpack.c.bf16 %v206, %v204
        %v217 = vpack.c.bf16 %v208, %v207
        %v218 = vpack.c.bf16 %v209, %v209
        %v219 = vld [vmem:[%s175] sm:$0xff]
        %v220 = vld [vmem:[%s175 + $0x8] sm:$0xff]
        %v221 = vld [vmem:[%s175 + $0x10] sm:$0xff]
        %v222 = vld [vmem:[%s175 + $0x18] sm:$0xff]
        %226 = vrot.lane.b32.xlu0 %v219, 126
        %v227 = vpop.permute.xlu0 %226
        %228 = vrot.lane.b32.xlu0 %v220, 126
        %v229 = vpop.permute.xlu0 %228
        %230 = vrot.lane.b32.xlu0 %v221, 126
        %v231 = vpop.permute.xlu0 %230
        %vm232 = vcmask 1031168
        %v233 = vsel %vm232, %v227, %v229
        %v234 = vsel %vm232, %v229, %v231
        %237 = vrot.lane.b32.xlu0 %v219, 124
        %v238 = vpop.permute.xlu0 %237
        %239 = vrot.lane.b32.xlu0 %v220, 124
        %v240 = vpop.permute.xlu0 %239
        %241 = vrot.lane.b32.xlu0 %v221, 124
        %v242 = vpop.permute.xlu0 %241
        %vm243 = vcmask 1014784
        %v244 = vsel %vm243, %v238, %v240
        %v245 = vsel %vm243, %v240, %v242
        %248 = vrot.lane.b32.xlu0 %v219, 96
        %v249 = vpop.permute.xlu0 %248
        %250 = vrot.lane.b32.xlu0 %v220, 96
        %v251 = vpop.permute.xlu0 %250
        %252 = vrot.lane.b32.xlu0 %v221, 96
        %v253 = vpop.permute.xlu0 %252
        %vm254 = vcmask 785408
        %v255 = vsel %vm254, %v249, %v251
        %v256 = vsel %vm254, %v251, %v253
        %259 = vrot.lane.b32.xlu0 %v219, 94
        %v260 = vpop.permute.xlu0 %259
        %261 = vrot.lane.b32.xlu0 %v220, 94
        %v262 = vpop.permute.xlu0 %261
        %263 = vrot.lane.b32.xlu0 %v221, 94
        %v264 = vpop.permute.xlu0 %263
        %vm265 = vcmask 769024
        %v266 = vsel %vm265, %v260, %v262
        %v267 = vsel %vm265, %v262, %v264
        %270 = vrot.lane.b32.xlu0 %v219, 92
        %v271 = vpop.permute.xlu0 %270
        %272 = vrot.lane.b32.xlu0 %v220, 92
        %v273 = vpop.permute.xlu0 %272
        %274 = vrot.lane.b32.xlu0 %v221, 92
        %v275 = vpop.permute.xlu0 %274
        %vm276 = vcmask 752640
        %v277 = vsel %vm276, %v271, %v273
        %v278 = vsel %vm276, %v273, %v275
        %281 = vrot.lane.b32.xlu0 %v219, 64
        %v282 = vpop.permute.xlu0 %281
        %283 = vrot.lane.b32.xlu0 %v220, 64
        %v284 = vpop.permute.xlu0 %283
        %285 = vrot.lane.b32.xlu0 %v221, 64
        %v286 = vpop.permute.xlu0 %285
        %vm287 = vcmask 523264
        %v288 = vsel %vm287, %v282, %v284
        %v289 = vsel %vm287, %v284, %v286
        %292 = vrot.lane.b32.xlu0 %v219, 62
        %v293 = vpop.permute.xlu0 %292
        %294 = vrot.lane.b32.xlu0 %v220, 62
        %v295 = vpop.permute.xlu0 %294
        %296 = vrot.lane.b32.xlu0 %v221, 62
        %v297 = vpop.permute.xlu0 %296
        %vm298 = vcmask 506880
        %v299 = vsel %vm298, %v293, %v295
        %v300 = vsel %vm298, %v295, %v297
        %303 = vrot.lane.b32.xlu0 %v219, 60
        %v304 = vpop.permute.xlu0 %303
        %305 = vrot.lane.b32.xlu0 %v220, 60
        %v306 = vpop.permute.xlu0 %305
        %307 = vrot.lane.b32.xlu0 %v221, 60
        %v308 = vpop.permute.xlu0 %307
        %vm309 = vcmask 490496
        %v310 = vsel %vm309, %v304, %v306
        %v311 = vsel %vm309, %v306, %v308
        %v314 = vpack.c.bf16 %v233, %v219
        %v315 = vpack.c.bf16 %v234, %v220
        %v316 = vpack.c.bf16 %v255, %v244
        %v317 = vpack.c.bf16 %v256, %v245
        %v318 = vpack.c.bf16 %v277, %v266
        %v319 = vpack.c.bf16 %v278, %v267
        %v320 = vpack.c.bf16 %v299, %v288
        %v321 = vpack.c.bf16 %v300, %v289
        %v322 = vpack.c.bf16 %v310, %v310
        %v323 = vpack.c.bf16 %v311, %v311
        %325 = vset.pattern.permute.xlu0 0
        %326 = vperm.xlu0 %325, %v214
        %v327 = vpop.permute.xlu0 %326
        %vm329 = vcmask 588800
        %v331 = vsel %vm329, %v218, 0
        %vm333 = vcmask 1043456
        %v335 = vsel %vm333, %v322, 0
        %v338 = vsel %vm333, %v323, 0
        %340 = vmatprep.subr.bf16.mxu0 %v315
        %341 = vmatpush1.bf16.msra.mxu0 %v314
        %342 = vmatprep.subr.bf16.mxu0 %v317
        %343 = vmatpush1.bf16.msra.mxu0 %v316
        %344 = vmatprep.subr.bf16.mxu0 %v319
        %345 = vmatpush1.bf16.msra.mxu0 %v318
        %346 = vmatprep.subr.bf16.mxu0 %v321
        %347 = vmatpush1.bf16.msra.mxu0 %v320
        %348 = vmatprep.subr.bf16.mxu0 %v338
        %349 = vmatpush1.bf16.msra.mxu0 %v335
        %350 = vmatprep.subr.bf16.mxu0 0
        %351 = vmatpush1.bf16.msra.mxu0 0
        %352 = vmatprep.subr.bf16.mxu0 0
        %353 = vmatpush1.bf16.msra.mxu0 0
        %354 = vmatprep.subr.bf16.mxu0 0
        %355 = vmatpush1.bf16.msra.mxu0 0
        %356 = vmatprep.subr.bf16.mxu0 0
        %357 = vmatpush1.bf16.msra.mxu0 0
        %358 = vmatprep.subr.bf16.mxu0 0
        %359 = vmatpush1.bf16.msra.mxu0 0
        %360 = vmatprep.subr.bf16.mxu0 0
        %361 = vmatpush1.bf16.msra.mxu0 0
        %362 = vmatprep.subr.bf16.mxu0 0
        %363 = vmatpush1.bf16.msra.mxu0 0
        %364 = vmatprep.subr.bf16.mxu0 0
        %365 = vmatpush1.bf16.msra.mxu0 0
        %366 = vmatprep.subr.bf16.mxu0 0
        %367 = vmatpush1.bf16.msra.mxu0 0
        %368 = vmatprep.subr.bf16.mxu0 0
        %369 = vmatpush1.bf16.msra.mxu0 0
        %370 = vmatprep.subr.bf16.mxu0 0
        %371 = vmatpush1.bf16.msra.mxu0 0
        %372 = vmatprep.mubr.bf16.mxu0 0
        %373 = vmatmul.mubr.bf16.gmra.mrb[0].mxu0 %v331
        %v374 = vpop.f32.mrb[0].mxu0
        %v375 = vadd.f32 %v327, %v374
        %v376 = vpop.f32.mrb[0].mxu0
        %v377 = vadd.f32 %v327, %v376
        %v378 = vpop.f32.mrb[0].mxu0
        %v379 = vpop.f32.mrb[0].mxu0
        %380 = vdwg.mxu0
        %382 = vrot.lane.b32.xlu0 %v219, 127
        %v383 = vpop.permute.xlu0 %382
        %384 = vrot.lane.b32.xlu0 %v220, 127
        %v385 = vpop.permute.xlu0 %384
        %386 = vrot.lane.b32.xlu0 %v221, 127
        %v387 = vpop.permute.xlu0 %386
        %388 = vrot.lane.b32.xlu0 %v222, 127
        %v389 = vpop.permute.xlu0 %388
        %vm390 = vcmask 1039360
        %v391 = vsel %vm390, %v383, %v385
        %v392 = vsel %vm390, %v385, %v387
        %v393 = vsel %vm390, %v387, %v389
        %397 = vrot.lane.b32.xlu0 %v222, 126
        %v398 = vpop.permute.xlu0 %397
        %v399 = vsel %vm232, %v231, %v398
        %401 = vrot.lane.b32.xlu0 %v219, 112
        %v402 = vpop.permute.xlu0 %401
        %403 = vrot.lane.b32.xlu0 %v220, 112
        %v404 = vpop.permute.xlu0 %403
        %405 = vrot.lane.b32.xlu0 %v221, 112
        %v406 = vpop.permute.xlu0 %405
        %407 = vrot.lane.b32.xlu0 %v222, 112
        %v408 = vpop.permute.xlu0 %407
        %vm409 = vcmask 916480
        %v410 = vsel %vm409, %v402, %v404
        %v411 = vsel %vm409, %v404, %v406
        %v412 = vsel %vm409, %v406, %v408
        %416 = vrot.lane.b32.xlu0 %v219, 111
        %v417 = vpop.permute.xlu0 %416
        %418 = vrot.lane.b32.xlu0 %v220, 111
        %v419 = vpop.permute.xlu0 %418
        %420 = vrot.lane.b32.xlu0 %v221, 111
        %v421 = vpop.permute.xlu0 %420
        %422 = vrot.lane.b32.xlu0 %v222, 111
        %v423 = vpop.permute.xlu0 %422
        %vm424 = vcmask 908288
        %v425 = vsel %vm424, %v417, %v419
        %v426 = vsel %vm424, %v419, %v421
        %v427 = vsel %vm424, %v421, %v423
        %431 = vrot.lane.b32.xlu0 %v219, 110
        %v432 = vpop.permute.xlu0 %431
        %433 = vrot.lane.b32.xlu0 %v220, 110
        %v434 = vpop.permute.xlu0 %433
        %435 = vrot.lane.b32.xlu0 %v221, 110
        %v436 = vpop.permute.xlu0 %435
        %437 = vrot.lane.b32.xlu0 %v222, 110
        %v438 = vpop.permute.xlu0 %437
        %vm439 = vcmask 900096
        %v440 = vsel %vm439, %v432, %v434
        %v441 = vsel %vm439, %v434, %v436
        %v442 = vsel %vm439, %v436, %v438
        %446 = vrot.lane.b32.xlu0 %v222, 96
        %v447 = vpop.permute.xlu0 %446
        %v448 = vsel %vm254, %v253, %v447
        %450 = vrot.lane.b32.xlu0 %v219, 95
        %v451 = vpop.permute.xlu0 %450
        %452 = vrot.lane.b32.xlu0 %v220, 95
        %v453 = vpop.permute.xlu0 %452
        %454 = vrot.lane.b32.xlu0 %v221, 95
        %v455 = vpop.permute.xlu0 %454
        %456 = vrot.lane.b32.xlu0 %v222, 95
        %v457 = vpop.permute.xlu0 %456
        %vm458 = vcmask 777216
        %v459 = vsel %vm458, %v451, %v453
        %v460 = vsel %vm458, %v453, %v455
        %v461 = vsel %vm458, %v455, %v457
        %465 = vrot.lane.b32.xlu0 %v222, 94
        %v466 = vpop.permute.xlu0 %465
        %v467 = vsel %vm265, %v264, %v466
        %v469 = vpack.c.bf16 %v391, %v219
        %v470 = vpack.c.bf16 %v392, %v220
        %v471 = vpack.c.bf16 %v393, %v221
        %v472 = vpack.c.bf16 %v410, %v233
        %v473 = vpack.c.bf16 %v411, %v234
        %v474 = vpack.c.bf16 %v412, %v399
        %v475 = vpack.c.bf16 %v440, %v425
        %v476 = vpack.c.bf16 %v441, %v426
        %v477 = vpack.c.bf16 %v442, %v427
        %v478 = vpack.c.bf16 %v459, %v255
        %v479 = vpack.c.bf16 %v460, %v256
        %v480 = vpack.c.bf16 %v461, %v448
        %v481 = vpack.c.bf16 %v266, %v266
        %v482 = vpack.c.bf16 %v267, %v267
        %v483 = vpack.c.bf16 %v467, %v467
        %485 = vset.pattern.permute.xlu0 0
        %486 = vperm.xlu0 %485, %v212
        %v487 = vpop.permute.xlu0 %486
        %490 = vset.pattern.permute.xlu0 0
        %491 = vperm.xlu0 %490, %v213
        %v492 = vpop.permute.xlu0 %491
        %v495 = vsel %vm329, %v217, 0
        %v498 = vsel %vm333, %v481, 0
        %v501 = vsel %vm333, %v482, 0
        %v504 = vsel %vm333, %v483, 0
        %506 = vmatprep.subr.bf16.mxu0 %v470
        %507 = vmatpush1.bf16.msra.mxu0 %v469
        %508 = vmatprep.subr.bf16.mxu0 %v473
        %509 = vmatpush1.bf16.msra.mxu0 %v472
        %510 = vmatprep.subr.bf16.mxu0 %v476
        %511 = vmatpush1.bf16.msra.mxu0 %v475
        %512 = vmatprep.subr.bf16.mxu0 %v479
        %513 = vmatpush1.bf16.msra.mxu0 %v478
        %514 = vmatprep.subr.bf16.mxu0 %v501
        %515 = vmatpush1.bf16.msra.mxu0 %v498
        %516 = vmatprep.subr.bf16.mxu0 0
        %517 = vmatpush1.bf16.msra.mxu0 0
        %518 = vmatprep.subr.bf16.mxu0 0
        %519 = vmatpush1.bf16.msra.mxu0 0
        %520 = vmatprep.subr.bf16.mxu0 0
        %521 = vmatpush1.bf16.msra.mxu0 0
        %522 = vmatprep.subr.bf16.mxu0 0
        %523 = vmatpush1.bf16.msra.mxu0 0
        %524 = vmatprep.subr.bf16.mxu0 0
        %525 = vmatpush1.bf16.msra.mxu0 0
        %526 = vmatprep.subr.bf16.mxu0 0
        %527 = vmatpush1.bf16.msra.mxu0 0
        %528 = vmatprep.subr.bf16.mxu0 0
        %529 = vmatpush1.bf16.msra.mxu0 0
        %530 = vmatprep.subr.bf16.mxu0 0
        %531 = vmatpush1.bf16.msra.mxu0 0
        %532 = vmatprep.subr.bf16.mxu0 0
        %533 = vmatpush1.bf16.msra.mxu0 0
        %534 = vmatprep.subr.bf16.mxu0 0
        %535 = vmatpush1.bf16.msra.mxu0 0
        %536 = vmatprep.subr.bf16.mxu0 0
        %537 = vmatpush1.bf16.msra.mxu0 0
        %538 = vmatprep.mubr.bf16.mxu0 0
        %539 = vmatmul.mubr.bf16.gmra.mrb[0].mxu0 %v495
        %v540 = vpop.f32.mrb[0].mxu0
        %v541 = vadd.f32 %v487, %v540
        %v542 = vpop.f32.mrb[0].mxu0
        %v543 = vadd.f32 %v487, %v542
        %v544 = vpop.f32.mrb[0].mxu0
        %v545 = vadd.f32 %v492, %v544
        %v546 = vpop.f32.mrb[0].mxu0
        %v547 = vadd.f32 %v492, %v546
        %548 = vdwg.mxu0
        %549 = vmatprep.subr.bf16.mxu0 0
        %550 = vmatpush1.bf16.msra.mxu0 %v471
        %551 = vmatprep.subr.bf16.mxu0 0
        %552 = vmatpush1.bf16.msra.mxu0 %v474
        %553 = vmatprep.subr.bf16.mxu0 0
        %554 = vmatpush1.bf16.msra.mxu0 %v477
        %555 = vmatprep.subr.bf16.mxu0 0
        %556 = vmatpush1.bf16.msra.mxu0 %v480
        %557 = vmatprep.subr.bf16.mxu0 0
        %558 = vmatpush1.bf16.msra.mxu0 %v504
        %559 = vmatprep.subr.bf16.mxu0 0
        %560 = vmatpush1.bf16.msra.mxu0 0
        %561 = vmatprep.subr.bf16.mxu0 0
        %562 = vmatpush1.bf16.msra.mxu0 0
        %563 = vmatprep.subr.bf16.mxu0 0
        %564 = vmatpush1.bf16.msra.mxu0 0
        %565 = vmatprep.subr.bf16.mxu0 0
        %566 = vmatpush1.bf16.msra.mxu0 0
        %567 = vmatprep.subr.bf16.mxu0 0
        %568 = vmatpush1.bf16.msra.mxu0 0
        %569 = vmatprep.subr.bf16.mxu0 0
        %570 = vmatpush1.bf16.msra.mxu0 0
        %571 = vmatprep.subr.bf16.mxu0 0
        %572 = vmatpush1.bf16.msra.mxu0 0
        %573 = vmatprep.subr.bf16.mxu0 0
        %574 = vmatpush1.bf16.msra.mxu0 0
        %575 = vmatprep.subr.bf16.mxu0 0
        %576 = vmatpush1.bf16.msra.mxu0 0
        %577 = vmatprep.subr.bf16.mxu0 0
        %578 = vmatpush1.bf16.msra.mxu0 0
        %579 = vmatprep.subr.bf16.mxu0 0
        %580 = vmatpush1.bf16.msra.mxu0 0
        %581 = vmatprep.mubr.bf16.mxu0 0
        %582 = vmatmul.mubr.bf16.gmra.mrb[0].mxu0 %v495
        %v583 = vpop.f32.mrb[0].mxu0
        %v584 = vadd.f32 %v487, %v583
        %v585 = vpop.f32.mrb[0].mxu0
        %v586 = vpop.f32.mrb[0].mxu0
        %v587 = vadd.f32 %v492, %v586
        %v588 = vpop.f32.mrb[0].mxu0
        %589 = vdwg.mxu0
        %v590 = vmax.f32 %v541, 0.0
        %v591 = vmax.f32 %v543, 0.0
        %v592 = vmax.f32 %v584, 0.0
        %v593 = vmax.f32 %v545, 0.0
        %v594 = vmax.f32 %v547, 0.0
        %v595 = vmax.f32 %v587, 0.0
        %vm596 = vcmp.ne.f32.partialorder %v541, %v541
        %vm597 = vcmp.ne.f32.partialorder %v543, %v543
        %vm598 = vcmp.ne.f32.partialorder %v584, %v584
        %vm599 = vcmp.ne.f32.partialorder %v545, %v545
        %vm600 = vcmp.ne.f32.partialorder %v547, %v547
        %vm601 = vcmp.ne.f32.partialorder %v587, %v587
        %v602 = vadd.f32 %v541, 0.0
        %v603 = vadd.f32 %v543, 0.0
        %v604 = vadd.f32 %v584, 0.0
        %v605 = vadd.f32 %v545, 0.0
        %v606 = vadd.f32 %v547, 0.0
        %v607 = vadd.f32 %v587, 0.0
        %v608 = vand.u32 2147483647, %v541
        %v609 = vand.u32 2147483647, %v543
        %v610 = vand.u32 2147483647, %v584
        %v611 = vand.u32 2147483647, %v545
        %v612 = vand.u32 2147483647, %v547
        %v613 = vand.u32 2147483647, %v587
        %v614 = vsub.f32 0.0, %v608
        %v615 = vsub.f32 0.0, %v609
        %v616 = vsub.f32 0.0, %v610
        %v617 = vsub.f32 0.0, %v611
        %v618 = vsub.f32 0.0, %v612
        %v619 = vsub.f32 0.0, %v613
        %v620 = vmul.f32 %v614, 1.442695
        %v621 = vpow.pop %v620
        %v622 = vmul.f32 %v615, 1.442695
        %v623 = vpow.pop %v622
        %v624 = vmul.f32 %v616, 1.442695
        %v625 = vpow.pop %v624
        %v626 = vmul.f32 %v617, 1.442695
        %v627 = vpow.pop %v626
        %v628 = vmul.f32 %v618, 1.442695
        %v629 = vpow.pop %v628
        %v630 = vmul.f32 %v619, 1.442695
        %v631 = vpow.pop %v630
        %v632 = vadd.f32 %v621, 1.0
        %v633 = vlog2.pop %v632
        %v634 = vmul.f32 %v633, 0.6931472
        %v635 = vmul.f32 -0.5, %v621
        %v636 = vadd.f32 %v635, 1.0
        %v637 = vmul.f32 %v636, %v621
        %v638 = vand.u32 2147483647, %v621
        %vm639 = vcmp.lt.f32.partialorder %v638, 0.0004427343
        %v640 = vsel %vm639, %v637, %v634
        %v641 = vadd.f32 %v623, 1.0
        %v642 = vlog2.pop %v641
        %v643 = vmul.f32 %v642, 0.6931472
        %v644 = vmul.f32 -0.5, %v623
        %v645 = vadd.f32 %v644, 1.0
        %v646 = vmul.f32 %v645, %v623
        %v647 = vand.u32 2147483647, %v623
        %vm648 = vcmp.lt.f32.partialorder %v647, 0.0004427343
        %v649 = vsel %vm648, %v646, %v643
        %v650 = vadd.f32 %v625, 1.0
        %v651 = vlog2.pop %v650
        %v652 = vmul.f32 %v651, 0.6931472
        %v653 = vmul.f32 -0.5, %v625
        %v654 = vadd.f32 %v653, 1.0
        %v655 = vmul.f32 %v654, %v625
        %v656 = vand.u32 2147483647, %v625
        %vm657 = vcmp.lt.f32.partialorder %v656, 0.0004427343
        %v658 = vsel %vm657, %v655, %v652
        %v659 = vadd.f32 %v627, 1.0
        %v660 = vlog2.pop %v659
        %v661 = vmul.f32 %v660, 0.6931472
        %v662 = vmul.f32 -0.5, %v627
        %v663 = vadd.f32 %v662, 1.0
        %v664 = vmul.f32 %v663, %v627
        %v665 = vand.u32 2147483647, %v627
        %vm666 = vcmp.lt.f32.partialorder %v665, 0.0004427343
        %v667 = vsel %vm666, %v664, %v661
        %v668 = vadd.f32 %v629, 1.0
        %v669 = vlog2.pop %v668
        %v670 = vmul.f32 %v669, 0.6931472
        %v671 = vmul.f32 -0.5, %v629
        %v672 = vadd.f32 %v671, 1.0
        %v673 = vmul.f32 %v672, %v629
        %v674 = vand.u32 2147483647, %v629
        %vm675 = vcmp.lt.f32.partialorder %v674, 0.0004427343
        %v676 = vsel %vm675, %v673, %v670
        %v677 = vadd.f32 %v631, 1.0
        %v678 = vlog2.pop %v677
        %v679 = vmul.f32 %v678, 0.6931472
        %v680 = vmul.f32 -0.5, %v631
        %v681 = vadd.f32 %v680, 1.0
        %v682 = vmul.f32 %v681, %v631
        %v683 = vand.u32 2147483647, %v631
        %vm684 = vcmp.lt.f32.partialorder %v683, 0.0004427343
        %v685 = vsel %vm684, %v682, %v679
        %v686 = vadd.f32 %v590, %v640
        %v687 = vadd.f32 %v591, %v649
        %v688 = vadd.f32 %v592, %v658
        %v689 = vadd.f32 %v593, %v667
        %v690 = vadd.f32 %v594, %v676
        %v691 = vadd.f32 %v595, %v685
        %v692 = vsel %vm596, %v602, %v686
        %v693 = vsel %vm597, %v603, %v687
        %v694 = vsel %vm598, %v604, %v688
        %v695 = vsel %vm599, %v605, %v689
        %v696 = vsel %vm600, %v606, %v690
        %v697 = vsel %vm601, %v607, %v691
        %704 = vrot.lane.b32.xlu0 %v692, 127
        %v705 = vpop.permute.xlu0 %704
        %706 = vrot.lane.b32.xlu0 %v693, 127
        %v707 = vpop.permute.xlu0 %706
        %708 = vrot.lane.b32.xlu0 %v694, 127
        %v709 = vpop.permute.xlu0 %708
        %710 = vrot.lane.b32.xlu0 %v695, 127
        %v711 = vpop.permute.xlu0 %710
        %712 = vrot.lane.b32.xlu0 %v696, 127
        %v713 = vpop.permute.xlu0 %712
        %714 = vrot.lane.b32.xlu0 %v697, 127
        %v715 = vpop.permute.xlu0 %714
        %v716 = vsel %vm390, %v705, %v707
        %v717 = vsel %vm390, %v707, %v709
        %v718 = vsel %vm390, %v711, %v713
        %v719 = vsel %vm390, %v713, %v715
        %724 = vrot.lane.b32.xlu0 %v692, 126
        %v725 = vpop.permute.xlu0 %724
        %726 = vrot.lane.b32.xlu0 %v693, 126
        %v727 = vpop.permute.xlu0 %726
        %728 = vrot.lane.b32.xlu0 %v694, 126
        %v729 = vpop.permute.xlu0 %728
        %730 = vrot.lane.b32.xlu0 %v695, 126
        %v731 = vpop.permute.xlu0 %730
        %732 = vrot.lane.b32.xlu0 %v696, 126
        %v733 = vpop.permute.xlu0 %732
        %734 = vrot.lane.b32.xlu0 %v697, 126
        %v735 = vpop.permute.xlu0 %734
        %v736 = vsel %vm232, %v725, %v727
        %v737 = vsel %vm232, %v727, %v729
        %v738 = vsel %vm232, %v731, %v733
        %v739 = vsel %vm232, %v733, %v735
        %744 = vrot.lane.b32.xlu0 %v692, 112
        %v745 = vpop.permute.xlu0 %744
        %746 = vrot.lane.b32.xlu0 %v693, 112
        %v747 = vpop.permute.xlu0 %746
        %748 = vrot.lane.b32.xlu0 %v694, 112
        %v749 = vpop.permute.xlu0 %748
        %750 = vrot.lane.b32.xlu0 %v695, 112
        %v751 = vpop.permute.xlu0 %750
        %752 = vrot.lane.b32.xlu0 %v696, 112
        %v753 = vpop.permute.xlu0 %752
        %754 = vrot.lane.b32.xlu0 %v697, 112
        %v755 = vpop.permute.xlu0 %754
        %v756 = vsel %vm409, %v745, %v747
        %v757 = vsel %vm409, %v747, %v749
        %v758 = vsel %vm409, %v751, %v753
        %v759 = vsel %vm409, %v753, %v755
        %764 = vrot.lane.b32.xlu0 %v692, 111
        %v765 = vpop.permute.xlu0 %764
        %766 = vrot.lane.b32.xlu0 %v693, 111
        %v767 = vpop.permute.xlu0 %766
        %768 = vrot.lane.b32.xlu0 %v694, 111
        %v769 = vpop.permute.xlu0 %768
        %770 = vrot.lane.b32.xlu0 %v695, 111
        %v771 = vpop.permute.xlu0 %770
        %772 = vrot.lane.b32.xlu0 %v696, 111
        %v773 = vpop.permute.xlu0 %772
        %774 = vrot.lane.b32.xlu0 %v697, 111
        %v775 = vpop.permute.xlu0 %774
        %v776 = vsel %vm424, %v765, %v767
        %v777 = vsel %vm424, %v767, %v769
        %v778 = vsel %vm424, %v771, %v773
        %v779 = vsel %vm424, %v773, %v775
        %784 = vrot.lane.b32.xlu0 %v692, 110
        %v785 = vpop.permute.xlu0 %784
        %786 = vrot.lane.b32.xlu0 %v693, 110
        %v787 = vpop.permute.xlu0 %786
        %788 = vrot.lane.b32.xlu0 %v694, 110
        %v789 = vpop.permute.xlu0 %788
        %790 = vrot.lane.b32.xlu0 %v695, 110
        %v791 = vpop.permute.xlu0 %790
        %792 = vrot.lane.b32.xlu0 %v696, 110
        %v793 = vpop.permute.xlu0 %792
        %794 = vrot.lane.b32.xlu0 %v697, 110
        %v795 = vpop.permute.xlu0 %794
        %v796 = vsel %vm439, %v785, %v787
        %v797 = vsel %vm439, %v787, %v789
        %v798 = vsel %vm439, %v791, %v793
        %v799 = vsel %vm439, %v793, %v795
        %804 = vrot.lane.b32.xlu0 %v692, 96
        %v805 = vpop.permute.xlu0 %804
        %806 = vrot.lane.b32.xlu0 %v693, 96
        %v807 = vpop.permute.xlu0 %806
        %808 = vrot.lane.b32.xlu0 %v694, 96
        %v809 = vpop.permute.xlu0 %808
        %810 = vrot.lane.b32.xlu0 %v695, 96
        %v811 = vpop.permute.xlu0 %810
        %812 = vrot.lane.b32.xlu0 %v696, 96
        %v813 = vpop.permute.xlu0 %812
        %814 = vrot.lane.b32.xlu0 %v697, 96
        %v815 = vpop.permute.xlu0 %814
        %v816 = vsel %vm254, %v805, %v807
        %v817 = vsel %vm254, %v807, %v809
        %v818 = vsel %vm254, %v811, %v813
        %v819 = vsel %vm254, %v813, %v815
        %824 = vrot.lane.b32.xlu0 %v692, 95
        %v825 = vpop.permute.xlu0 %824
        %826 = vrot.lane.b32.xlu0 %v693, 95
        %v827 = vpop.permute.xlu0 %826
        %828 = vrot.lane.b32.xlu0 %v694, 95
        %v829 = vpop.permute.xlu0 %828
        %830 = vrot.lane.b32.xlu0 %v695, 95
        %v831 = vpop.permute.xlu0 %830
        %832 = vrot.lane.b32.xlu0 %v696, 95
        %v833 = vpop.permute.xlu0 %832
        %834 = vrot.lane.b32.xlu0 %v697, 95
        %v835 = vpop.permute.xlu0 %834
        %v836 = vsel %vm458, %v825, %v827
        %v837 = vsel %vm458, %v827, %v829
        %v838 = vsel %vm458, %v831, %v833
        %v839 = vsel %vm458, %v833, %v835
        %844 = vrot.lane.b32.xlu0 %v692, 94
        %v845 = vpop.permute.xlu0 %844
        %846 = vrot.lane.b32.xlu0 %v693, 94
        %v847 = vpop.permute.xlu0 %846
        %848 = vrot.lane.b32.xlu0 %v694, 94
        %v849 = vpop.permute.xlu0 %848
        %850 = vrot.lane.b32.xlu0 %v695, 94
        %v851 = vpop.permute.xlu0 %850
        %852 = vrot.lane.b32.xlu0 %v696, 94
        %v853 = vpop.permute.xlu0 %852
        %854 = vrot.lane.b32.xlu0 %v697, 94
        %v855 = vpop.permute.xlu0 %854
        %v856 = vsel %vm265, %v845, %v847
        %v857 = vsel %vm265, %v847, %v849
        %v858 = vsel %vm265, %v851, %v853
        %v859 = vsel %vm265, %v853, %v855
        %v864 = vpack.c.bf16 %v695, %v692
        %v865 = vpack.c.bf16 %v696, %v693
        %v866 = vpack.c.bf16 %v718, %v716
        %v867 = vpack.c.bf16 %v719, %v717
        %v868 = vpack.c.bf16 %v738, %v736
        %v869 = vpack.c.bf16 %v739, %v737
        %v870 = vpack.c.bf16 %v758, %v756
        %v871 = vpack.c.bf16 %v759, %v757
        %v872 = vpack.c.bf16 %v778, %v776
        %v873 = vpack.c.bf16 %v779, %v777
        %v874 = vpack.c.bf16 %v798, %v796
        %v875 = vpack.c.bf16 %v799, %v797
        %v876 = vpack.c.bf16 %v818, %v816
        %v877 = vpack.c.bf16 %v819, %v817
        %v878 = vpack.c.bf16 %v838, %v836
        %v879 = vpack.c.bf16 %v839, %v837
        %v880 = vpack.c.bf16 %v858, %v856
        %v881 = vpack.c.bf16 %v859, %v857
        %883 = vset.pattern.permute.xlu0 0
        %884 = vperm.xlu0 %883, %v210
        %v885 = vpop.permute.xlu0 %884
        %888 = vset.pattern.permute.xlu0 0
        %889 = vperm.xlu0 %888, %v211
        %v890 = vpop.permute.xlu0 %889
        %vm892 = vcmask 130048
        %v894 = vsel %vm892, %v216, 0
        %896 = vmatprep.subr.bf16.mxu0 %v865
        %897 = vmatpush1.bf16.msra.mxu0 %v864
        %898 = vmatprep.subr.bf16.mxu0 %v867
        %899 = vmatpush1.bf16.msra.mxu0 %v866
        %900 = vmatprep.subr.bf16.mxu0 %v869
        %901 = vmatpush1.bf16.msra.mxu0 %v868
        %902 = vmatprep.subr.bf16.mxu0 %v871
        %903 = vmatpush1.bf16.msra.mxu0 %v870
        %904 = vmatprep.subr.bf16.mxu0 %v873
        %905 = vmatpush1.bf16.msra.mxu0 %v872
        %906 = vmatprep.subr.bf16.mxu0 %v875
        %907 = vmatpush1.bf16.msra.mxu0 %v874
        %908 = vmatprep.subr.bf16.mxu0 %v877
        %909 = vmatpush1.bf16.msra.mxu0 %v876
        %910 = vmatprep.subr.bf16.mxu0 %v879
        %911 = vmatpush1.bf16.msra.mxu0 %v878
        %912 = vmatprep.subr.bf16.mxu0 %v881
        %913 = vmatpush1.bf16.msra.mxu0 %v880
        %914 = vmatprep.subr.bf16.mxu0 0
        %915 = vmatpush1.bf16.msra.mxu0 0
        %916 = vmatprep.subr.bf16.mxu0 0
        %917 = vmatpush1.bf16.msra.mxu0 0
        %918 = vmatprep.subr.bf16.mxu0 0
        %919 = vmatpush1.bf16.msra.mxu0 0
        %920 = vmatprep.subr.bf16.mxu0 0
        %921 = vmatpush1.bf16.msra.mxu0 0
        %922 = vmatprep.subr.bf16.mxu0 0
        %923 = vmatpush1.bf16.msra.mxu0 0
        %924 = vmatprep.subr.bf16.mxu0 0
        %925 = vmatpush1.bf16.msra.mxu0 0
        %926 = vmatprep.subr.bf16.mxu0 0
        %927 = vmatpush1.bf16.msra.mxu0 0
        %928 = vmatprep.mubr.bf16.mxu0 %v894
        %929 = vmatmul.mubr.bf16.gmra.mrb[0].mxu0 %v215
        %v930 = vpop.f32.mrb[0].mxu0
        %v931 = vadd.f32 %v885, %v930
        %v932 = vpop.f32.mrb[0].mxu0
        %v933 = vadd.f32 %v885, %v932
        %v934 = vpop.f32.mrb[0].mxu0
        %v935 = vadd.f32 %v890, %v934
        %v936 = vpop.f32.mrb[0].mxu0
        %v937 = vadd.f32 %v890, %v936
        %938 = vdwg.mxu0
        %939 = vst [vmem:[%s201] sm:$0xff] %v375
        %940 = vst [vmem:[%s201 + $0x8] sm:$0xff] %v377
        %941 = vst [vmem:[%s201 + $0x10] sm:$0xff] %v931
        %942 = vst [vmem:[%s201 + $0x18] sm:$0xff] %v933
        %943 = vst [vmem:[%s201 + $0x20] sm:$0xff] %v935
        %944 = vst [vmem:[%s201 + $0x28] sm:$0xff] %v937
        %s945 = sand.u32 %s97, 1
        %s946 = scalar_lea.sflag [#allocation4], %s945
        %s947 = sand.u32 %s97, 1
        %s948 = smul.addr %s947, 48
        %s949 = scalar_lea.vmem [#allocation7], %s948
        // Predicated region
        $region41: #{tpu_custom_call.1} parent=31 // pred_check
          %p950 = pneg %p107
        $region42: #{tpu_custom_call.1} parent=31 // pred_check_branch
          %952 = sbr.rel (%p950) target = $region44
        $region43: #{tpu_custom_call.1} parent=31 // pred_region
          %s954 = ssub.s32 768, 768
          %955 = vsyncadd %s946, %s954
          %s956 = smul.addr %s21, 6
          %s957 = smul.addr %s956, 128
          %s958 = scalar_lea.hbm %s3, %s957
          %s959 = sshll.u32 %s949, 4
          %s960 = int_to_ptr.vmem [resolvable:$true] %s959
          %965 = dma.vmem_to_hbm [thread:$0]  %s960, 768, %s958, %s946, 256, 256, 16
        $region44: #{tpu_custom_call.1} parent=31 // pred_fallthru
          _
      $region32: #{tpu_custom_call.1} parent=5 // pred_fallthru
        _
      %p966 = scmp.le.s32.totalorder 2, %s16
      // Predicated region
      $region45: #{tpu_custom_call.1} parent=5 // pred_check
        %p967 = pneg %p966
      $region46: #{tpu_custom_call.1} parent=5 // pred_check_branch
        %969 = sbr.rel (%p967) target = $region48
      $region47: #{tpu_custom_call.1} parent=5 // pred_region
        %s970 = ssub.s32 %s16, 2
        // Predicated region
        $region49: #{tpu_custom_call.1} parent=47 // pred_check
          %p971 = pneg %p113
        $region50: #{tpu_custom_call.1} parent=47 // pred_check_branch
          %973 = sbr.rel (%p971) target = $region52
        $region51: #{tpu_custom_call.1} parent=47 // pred_region
          %s974 = sand.u32 %s98, 1
          %s975 = scalar_lea.sflag [#allocation4], %s974
          %s976 = sand.u32 %s98, 1
          %s977 = smul.addr %s976, 48
          %s978 = scalar_lea.vmem [#allocation7], %s977
          %979 = dma.done %s975, 768
        $region52: #{tpu_custom_call.1} parent=47 // pred_fallthru
          _
      $region48: #{tpu_custom_call.1} parent=5 // pred_fallthru
        _
    $region6: #{tpu_custom_call.1} parent=1 // loop_footer
      %s20 = sadd.s32 1, %s16
    $region7: #{tpu_custom_call.1} parent=1 // loop_footer_branch
      %15 = sbr.rel target = $region3
    $region8: #{tpu_custom_call.1} parent=1 // loop_exit
      _
    %980 = vsyncpa [#allocation3], 1
    %s981 = scalar_lea.sflag [#allocation3], 1
    %982 = vsyncpa %s981, 1
    %983 = vsyncpa [#allocation6], 1
    %984 = vsyncpa [#allocation4], 1
    %s985 = scalar_lea.sflag [#allocation4], 1
    %986 = vsyncpa %s985, 1

</llo_original>
